<compile_context>
chip_gen: v6e
topology: v6e:2x2x1
jax: 0.10.0
libtpu: 0.0.40
codegen_flags: <defaults>
</compile_context>

<pallas_src>
import math

import jax
import jax.numpy as jnp
from jax.experimental import pallas as pl
from jax.experimental.pallas import tpu as pltpu


# ----------------------------- helpers -------------------------------------

def _round_up(x, m):
    return ((x + m - 1) // m) * m


def _device_kind():
    try:
        return jax.devices()[0].device_kind.lower()
    except Exception:
        return ""


def _pick_epilogue_dtype():
    # bf16 VPU exists on v6e / v7x; v5e (and older) epilogues stay f32.
    kind = _device_kind()
    if "v6" in kind or "v7" in kind:
        return jnp.bfloat16
    return jnp.float32


# ----------------------------- kernel --------------------------------------

def mapping_kernel(z_ref,
                   w1_ref, b1_ref,
                   w2_ref, b2_ref,
                   w3_ref, b3_ref,
                   w4_ref, b4_ref,
                   out_ref):
    mxu_dtype = w1_ref.dtype  # bf16 MXU operands, f32 accumulation

    def hidden_epilogue(acc_f32, b_ref):
        # Bias add + LeakyReLU(0.2) in the bias dtype (bf16 on v6e/v7x,
        # f32 on v5e).  LeakyReLU = max(x, 0.2*x): 2 VPU ops.
        x = acc_f32.astype(b_ref.dtype) + b_ref[...]
        x = jnp.maximum(x, x * 0.2)
        return x.astype(mxu_dtype)

    h = hidden_epilogue(
        jnp.dot(z_ref[...], w1_ref[...], preferred_element_type=jnp.float32),
        b1_ref)
    h = hidden_epilogue(
        jnp.dot(h, w2_ref[...], preferred_element_type=jnp.float32), b2_ref)
    h = hidden_epilogue(
        jnp.dot(h, w3_ref[...], preferred_element_type=jnp.float32), b3_ref)

    # Final Linear: keep the bias add in f32 (single pass before the
    # quantizing output cast), then store the lane-dense combined slab.
    out = jnp.dot(h, w4_ref[...],
                  preferred_element_type=jnp.float32) + b4_ref[...]
    out_ref[...] = out.astype(out_ref.dtype)


# ----------------------------- param prep (hoisted, once) ------------------

def prepare_params(params, mxu_dtype=jnp.bfloat16, epilogue_dtype=None):
    """Cast + zero-pad the parameters once (outside the per-call wrapper).

    Weights -> mxu_dtype (bf16), hidden biases -> epilogue dtype (bf16 on
    v6e/v7x, f32 on v5e), final bias -> f32.  Hidden/output feature dims are
    zero-padded to multiples of 128 so every MXU/store tile is lane-dense;
    the padding is exact (LeakyReLU(0)=0) and sliced off in the wrapper.
    """
    if epilogue_dtype is None:
        epilogue_dtype = _pick_epilogue_dtype()

    z_dim, hidden = params["w1"].shape
    out_dim = params["w4"].shape[1]
    hidden_p = _round_up(hidden, 128)
    out_p = _round_up(out_dim, 128)

    def pad2(a, rows, cols):
        return jnp.pad(a, ((0, rows - a.shape[0]), (0, cols - a.shape[1])))

    prepared = {
        "w1": pad2(params["w1"], z_dim, hidden_p).astype(mxu_dtype),
        "b1": pad2(params["b1"], 1, hidden_p).astype(epilogue_dtype),
        "w2": pad2(params["w2"], hidden_p, hidden_p).astype(mxu_dtype),
        "b2": pad2(params["b2"], 1, hidden_p).astype(epilogue_dtype),
        "w3": pad2(params["w3"], hidden_p, hidden_p).astype(mxu_dtype),
        "b3": pad2(params["b3"], 1, hidden_p).astype(epilogue_dtype),
        "w4": pad2(params["w4"], hidden_p, out_p).astype(mxu_dtype),
        "b4": pad2(params["b4"], 1, out_p).astype(jnp.float32),
        "out_dim": int(out_dim),
    }
    return prepared


# ----------------------------- wrapper --------------------------------------

def custom_mapping_network(z, prepared, tile_b=512, out_dtype=jnp.bfloat16):
    """z: (B, z_dim) f32.  prepared: output of prepare_params().

    Returns (frequencies, phase_shifts), each (B, map_output_dim // 2),
    dtype = out_dtype (bf16 default; pass jnp.float32 for full precision).
    """
    B, z_dim = z.shape
    w1, b1 = prepared["w1"], prepared["b1"]
    w2, b2 = prepared["w2"], prepared["b2"]
    w3, b3 = prepared["w3"], prepared["b3"]
    w4, b4 = prepared["w4"], prepared["b4"]
    out_dim = prepared["out_dim"]
    hidden_p = w1.shape[1]
    out_p = w4.shape[1]
    mxu_dtype = w1.dtype
    out_bytes = jnp.dtype(out_dtype).itemsize

    # ---- batch tiling + per-chip VMEM budgeting -----------------------------
    tile_b = max(16, (int(tile_b) // 16) * 16)
    b_pad = _round_up(max(B, 16), 16)           # bf16 sublane packing (16 rows)

    kind = _device_kind()
    if "v7" in kind:                            # v7x: 64 MiB physical VMEM/TC
        vmem_budget, vmem_limit = 28 << 20, 36 << 20
    else:                                       # v5e/v6e: 128 MiB physical
        vmem_budget, vmem_limit = 56 << 20, 64 << 20

    weights = (w1, b1, w2, b2, w3, b3, w4, b4)
    fixed_bytes = 2 * sum(int(a.size) * a.dtype.itemsize for a in weights)
    per_row = (2 * 2 * z_dim              # z tile (bf16), double-buffered
               + 2 * out_bytes * out_p    # output tile, double-buffered
               + 12 * hidden_p)           # in-flight activation headroom
    cap = max(16, (max(vmem_budget - fixed_bytes, 0) // per_row) // 16 * 16)

    # >= 2 grid steps when possible so v7x can shard batch tiles across its
    # two TensorCores (near-neutral on v5e/v6e).
    half_split = _round_up(-(-b_pad // 2), 16)
    tile = max(16, min(tile_b, cap, b_pad, half_split))
    b_pad = _round_up(b_pad, tile)
    grid = (b_pad // tile,)

    z_p = z.astype(mxu_dtype)
    if b_pad != B:
        z_p = jnp.pad(z_p, ((0, b_pad - B), (0, 0)))

    batched = lambda i: (i, 0)     # z / output tiles walk the batch axis
    resident = lambda i: (0, 0)    # weights & biases stay put in VMEM

    def _call(resident_mode):
        if resident_mode is None:
            def rspec(shape):
                return pl.BlockSpec(shape, resident)
        else:
            def rspec(shape):
                return pl.BlockSpec(shape, resident,
                                    pipeline_mode=resident_mode)
        return pl.pallas_call(
            mapping_kernel,
            out_shape=jax.ShapeDtypeStruct((b_pad, out_p), out_dtype),
            grid_spec=pltpu.PrefetchScalarGridSpec(
                num_scalar_prefetch=0,
                grid=grid,
                in_specs=[
                    pl.BlockSpec((tile, z_dim), batched),
                    rspec((z_dim, hidden_p)), rspec((1, hidden_p)),
                    rspec((hidden_p, hidden_p)), rspec((1, hidden_p)),
                    rspec((hidden_p, hidden_p)), rspec((1, hidden_p)),
                    rspec((hidden_p, out_p)), rspec((1, out_p)),
                ],
                out_specs=pl.BlockSpec((tile, out_p), batched),
            ),
            compiler_params=pltpu.CompilerParams(
                dimension_semantics=("parallel",),
                vmem_limit_bytes=vmem_limit),
        )(z_p, w1, b1, w2, b2, w3, b3, w4, b4)

    try:
        # Weights/biases never change across grid steps: single-buffer them
        # to reclaim VMEM for larger batch tiles.
        out = _call(pl.Buffered(1))
        jax.block_until_ready(out)
    except Exception:
        # Fallback: default double-buffered resident specs.
        out = _call(None)

    out = out[:B, :out_dim]
    half = out_dim // 2
    return out[:, :half], out[:, half:]


# ----------------------------- init (matches PyTorch module) ----------------

def init_params(key, z_dim, map_hidden_dim, map_output_dim, dtype=jnp.float32):
    """kaiming_normal_(a=0.2, fan_in, leaky_relu) on all Linear weights,
    default PyTorch uniform bias init, final weight * 0.25.
    Weights stored pre-transposed as (in_features, out_features)."""
    a = 0.2
    gain = math.sqrt(2.0 / (1.0 + a * a))
    dims = [(z_dim, map_hidden_dim),
            (map_hidden_dim, map_hidden_dim),
            (map_hidden_dim, map_hidden_dim),
            (map_hidden_dim, map_output_dim)]
    params = {}
    for i, (fan_in, fan_out) in enumerate(dims, start=1):
        key, kw, kb = jax.random.split(key, 3)
        std = gain / math.sqrt(fan_in)
        w = jax.random.normal(kw, (fan_in, fan_out), dtype=jnp.float32) * std
        bound = 1.0 / math.sqrt(fan_in)
        b = jax.random.uniform(kb, (1, fan_out), dtype=jnp.float32,
                               minval=-bound, maxval=bound)
        params[f"w{i}"] = w.astype(dtype)
        params[f"b{i}"] = b.astype(dtype)
    params["w4"] = params["w4"] * 0.25   # self.network[-1].weight *= 0.25
    return params


# ----------------------------- pure-JAX reference ---------------------------

def reference_forward(z, prepared, out_dtype=jnp.bfloat16):
    """Pure-JAX reference reproducing the kernel numerics exactly (bf16 MXU
    operands, f32 accumulation, bias/LeakyReLU in the prepared bias dtype)."""
    out_dim = prepared["out_dim"]
    mxu_dtype = prepared["w1"].dtype
    h = z.astype(mxu_dtype)
    for i in range(1, 4):
        w, b = prepared[f"w{i}"], prepared[f"b{i}"]
        pre = jnp.dot(h, w, preferred_element_type=jnp.float32)
        pre = pre.astype(b.dtype) + b
        pre = jnp.maximum(pre, pre * 0.2)
        h = pre.astype(mxu_dtype)
    out = jnp.dot(h, prepared["w4"],
                  preferred_element_type=jnp.float32) + prepared["b4"]
    out = out.astype(out_dtype)[:, :out_dim]
    half = out_dim // 2
    return out[:, :half], out[:, half:]


# ----------------------------- demo -----------------------------------------

if __name__ == "__main__":
    # Small shapes consistent with the module: z_dim=32, hidden=64, output=64
    # (output split into two halves of 32: frequencies and phase_shifts).
    B, Z_DIM, HIDDEN, OUT_DIM = 8, 32, 64, 64

    key = jax.random.PRNGKey(0)
    key, kz = jax.random.split(key)
    z = jax.random.normal(kz, (B, Z_DIM), dtype=jnp.float32)

    params = init_params(key, Z_DIM, HIDDEN, OUT_DIM)
    prepared = prepare_params(params)        # cast + pad once, outside the call

    freq, phase = custom_mapping_network(z, prepared)
    jax.block_until_ready((freq, phase))

    ref_freq, ref_phase = reference_forward(z, prepared)
    assert freq.shape == (B, OUT_DIM // 2) and phase.shape == (B, OUT_DIM // 2)
    assert jnp.allclose(freq.astype(jnp.float32), ref_freq.astype(jnp.float32),
                        atol=2e-2, rtol=2e-2)
    assert jnp.allclose(phase.astype(jnp.float32), ref_phase.astype(jnp.float32),
                        atol=2e-2, rtol=2e-2)

    print("KERNEL_OK")
</pallas_src>

<mosaic_0001>
module attributes {stable_mosaic.version = 11 : i64} {
  func.func @mapping_kernel(%arg0: i32, %arg1: memref<16x32xbf16, #tpu.memory_space<vmem>>, %arg2: memref<32x128xbf16, #tpu.memory_space<vmem>>, %arg3: memref<1x128xf32, #tpu.memory_space<vmem>>, %arg4: memref<128x128xbf16, #tpu.memory_space<vmem>>, %arg5: memref<1x128xf32, #tpu.memory_space<vmem>>, %arg6: memref<128x128xbf16, #tpu.memory_space<vmem>>, %arg7: memref<1x128xf32, #tpu.memory_space<vmem>>, %arg8: memref<128x128xbf16, #tpu.memory_space<vmem>>, %arg9: memref<1x128xf32, #tpu.memory_space<vmem>>, %arg10: memref<16x128xbf16, #tpu.memory_space<vmem>>) attributes {dimension_semantics = [#tpu.dimension_semantics<parallel>], iteration_bounds = array<i64: 1>, scalar_prefetch = 0 : i64, scratch_operands = 0 : i64, tpu.core_type = #tpu.core_type<tc>, window_params = [{transform_indices = @transform_0, window_bounds = array<i64: 16, 32>}, {pipeline_mode = #tpu.pipeline_mode<synchronous>, transform_indices = @transform_1, window_bounds = array<i64: 32, 128>}, {pipeline_mode = #tpu.pipeline_mode<synchronous>, transform_indices = @transform_2, window_bounds = array<i64: 1, 128>}, {pipeline_mode = #tpu.pipeline_mode<synchronous>, transform_indices = @transform_3, window_bounds = array<i64: 128, 128>}, {pipeline_mode = #tpu.pipeline_mode<synchronous>, transform_indices = @transform_4, window_bounds = array<i64: 1, 128>}, {pipeline_mode = #tpu.pipeline_mode<synchronous>, transform_indices = @transform_5, window_bounds = array<i64: 128, 128>}, {pipeline_mode = #tpu.pipeline_mode<synchronous>, transform_indices = @transform_6, window_bounds = array<i64: 1, 128>}, {pipeline_mode = #tpu.pipeline_mode<synchronous>, transform_indices = @transform_7, window_bounds = array<i64: 128, 128>}, {pipeline_mode = #tpu.pipeline_mode<synchronous>, transform_indices = @transform_8, window_bounds = array<i64: 1, 128>}, {transform_indices = @transform_9, window_bounds = array<i64: 16, 128>}]} {
    %c0 = arith.constant 0 : index
    %c0_0 = arith.constant 0 : index
    %0 = vector.load %arg1[%c0, %c0_0] : memref<16x32xbf16, #tpu.memory_space<vmem>>, vector<16x32xbf16>
    %c0_1 = arith.constant 0 : index
    %c0_2 = arith.constant 0 : index
    %1 = vector.load %arg2[%c0_1, %c0_2] : memref<32x128xbf16, #tpu.memory_space<vmem>>, vector<32x128xbf16>
    %cst = arith.constant dense<0.000000e+00> : vector<16x128xf32>
    %2 = tpu.matmul %0, %1, %cst {dimension_numbers = #tpu.dot_dimension_numbers<[1], [0], [0], [1], [0, 0, 1, 1], [], []>} : vector<16x32xbf16>, vector<32x128xbf16>, vector<16x128xf32> -> vector<16x128xf32>
    %c0_3 = arith.constant 0 : index
    %c0_4 = arith.constant 0 : index
    %3 = vector.load %arg3[%c0_3, %c0_4] : memref<1x128xf32, #tpu.memory_space<vmem>>, vector<1x128xf32>
    %4 = vector.broadcast %3 : vector<1x128xf32> to vector<16x128xf32>
    %5 = arith.addf %2, %4 : vector<16x128xf32>
    %cst_5 = arith.constant 2.000000e-01 : f32
    %6 = vector.broadcast %cst_5 : f32 to vector<16x128xf32>
    %7 = arith.mulf %5, %6 : vector<16x128xf32>
    %8 = arith.maximumf %5, %7 : vector<16x128xf32>
    %9 = arith.truncf %8 : vector<16x128xf32> to vector<16x128xbf16>
    %c0_6 = arith.constant 0 : index
    %c0_7 = arith.constant 0 : index
    %10 = vector.load %arg4[%c0_6, %c0_7] : memref<128x128xbf16, #tpu.memory_space<vmem>>, vector<128x128xbf16>
    %cst_8 = arith.constant dense<0.000000e+00> : vector<16x128xf32>
    %11 = tpu.matmul %9, %10, %cst_8 {dimension_numbers = #tpu.dot_dimension_numbers<[1], [0], [0], [1], [0, 0, 1, 1], [], []>} : vector<16x128xbf16>, vector<128x128xbf16>, vector<16x128xf32> -> vector<16x128xf32>
    %c0_9 = arith.constant 0 : index
    %c0_10 = arith.constant 0 : index
    %12 = vector.load %arg5[%c0_9, %c0_10] : memref<1x128xf32, #tpu.memory_space<vmem>>, vector<1x128xf32>
    %13 = vector.broadcast %12 : vector<1x128xf32> to vector<16x128xf32>
    %14 = arith.addf %11, %13 : vector<16x128xf32>
    %cst_11 = arith.constant 2.000000e-01 : f32
    %15 = vector.broadcast %cst_11 : f32 to vector<16x128xf32>
    %16 = arith.mulf %14, %15 : vector<16x128xf32>
    %17 = arith.maximumf %14, %16 : vector<16x128xf32>
    %18 = arith.truncf %17 : vector<16x128xf32> to vector<16x128xbf16>
    %c0_12 = arith.constant 0 : index
    %c0_13 = arith.constant 0 : index
    %19 = vector.load %arg6[%c0_12, %c0_13] : memref<128x128xbf16, #tpu.memory_space<vmem>>, vector<128x128xbf16>
    %cst_14 = arith.constant dense<0.000000e+00> : vector<16x128xf32>
    %20 = tpu.matmul %18, %19, %cst_14 {dimension_numbers = #tpu.dot_dimension_numbers<[1], [0], [0], [1], [0, 0, 1, 1], [], []>} : vector<16x128xbf16>, vector<128x128xbf16>, vector<16x128xf32> -> vector<16x128xf32>
    %c0_15 = arith.constant 0 : index
    %c0_16 = arith.constant 0 : index
    %21 = vector.load %arg7[%c0_15, %c0_16] : memref<1x128xf32, #tpu.memory_space<vmem>>, vector<1x128xf32>
    %22 = vector.broadcast %21 : vector<1x128xf32> to vector<16x128xf32>
    %23 = arith.addf %20, %22 : vector<16x128xf32>
    %cst_17 = arith.constant 2.000000e-01 : f32
    %24 = vector.broadcast %cst_17 : f32 to vector<16x128xf32>
    %25 = arith.mulf %23, %24 : vector<16x128xf32>
    %26 = arith.maximumf %23, %25 : vector<16x128xf32>
    %27 = arith.truncf %26 : vector<16x128xf32> to vector<16x128xbf16>
    %c0_18 = arith.constant 0 : index
    %c0_19 = arith.constant 0 : index
    %28 = vector.load %arg8[%c0_18, %c0_19] : memref<128x128xbf16, #tpu.memory_space<vmem>>, vector<128x128xbf16>
    %cst_20 = arith.constant dense<0.000000e+00> : vector<16x128xf32>
    %29 = tpu.matmul %27, %28, %cst_20 {dimension_numbers = #tpu.dot_dimension_numbers<[1], [0], [0], [1], [0, 0, 1, 1], [], []>} : vector<16x128xbf16>, vector<128x128xbf16>, vector<16x128xf32> -> vector<16x128xf32>
    %c0_21 = arith.constant 0 : index
    %c0_22 = arith.constant 0 : index
    %30 = vector.load %arg9[%c0_21, %c0_22] : memref<1x128xf32, #tpu.memory_space<vmem>>, vector<1x128xf32>
    %31 = vector.broadcast %30 : vector<1x128xf32> to vector<16x128xf32>
    %32 = arith.addf %29, %31 : vector<16x128xf32>
    %33 = arith.truncf %32 : vector<16x128xf32> to vector<16x128xbf16>
    %c0_23 = arith.constant 0 : index
    %c0_24 = arith.constant 0 : index
    %34 = vector.load %arg10[%c0_23, %c0_24] : memref<16x128xbf16, #tpu.memory_space<vmem>>, vector<16x128xbf16>
    tpu.vector_store %arg10[%c0_23, %c0_24], %33 {strides = array<i32>} : memref<16x128xbf16, #tpu.memory_space<vmem>>, vector<16x128xbf16>,
    return
  }
  func.func @transform_0(%arg0: i32) -> (i32, i32) {
    %c0_i32 = arith.constant 0 : i32
    %c0_i32_0 = arith.constant 0 : i32
    return %arg0, %c0_i32 : i32, i32
  }
  func.func @transform_1(%arg0: i32) -> (i32, i32) {
    %c0_i32 = arith.constant 0 : i32
    %c0_i32_0 = arith.constant 0 : i32
    %c0_i32_1 = arith.constant 0 : i32
    return %c0_i32, %c0_i32_0 : i32, i32
  }
  func.func @transform_2(%arg0: i32) -> (i32, i32) {
    %c0_i32 = arith.constant 0 : i32
    %c0_i32_0 = arith.constant 0 : i32
    %c0_i32_1 = arith.constant 0 : i32
    return %c0_i32, %c0_i32_0 : i32, i32
  }
  func.func @transform_3(%arg0: i32) -> (i32, i32) {
    %c0_i32 = arith.constant 0 : i32
    %c0_i32_0 = arith.constant 0 : i32
    %c0_i32_1 = arith.constant 0 : i32
    return %c0_i32, %c0_i32_0 : i32, i32
  }
  func.func @transform_4(%arg0: i32) -> (i32, i32) {
    %c0_i32 = arith.constant 0 : i32
    %c0_i32_0 = arith.constant 0 : i32
    %c0_i32_1 = arith.constant 0 : i32
    return %c0_i32, %c0_i32_0 : i32, i32
  }
  func.func @transform_5(%arg0: i32) -> (i32, i32) {
    %c0_i32 = arith.constant 0 : i32
    %c0_i32_0 = arith.constant 0 : i32
    %c0_i32_1 = arith.constant 0 : i32
    return %c0_i32, %c0_i32_0 : i32, i32
  }
  func.func @transform_6(%arg0: i32) -> (i32, i32) {
    %c0_i32 = arith.constant 0 : i32
    %c0_i32_0 = arith.constant 0 : i32
    %c0_i32_1 = arith.constant 0 : i32
    return %c0_i32, %c0_i32_0 : i32, i32
  }
  func.func @transform_7(%arg0: i32) -> (i32, i32) {
    %c0_i32 = arith.constant 0 : i32
    %c0_i32_0 = arith.constant 0 : i32
    %c0_i32_1 = arith.constant 0 : i32
    return %c0_i32, %c0_i32_0 : i32, i32
  }
  func.func @transform_8(%arg0: i32) -> (i32, i32) {
    %c0_i32 = arith.constant 0 : i32
    %c0_i32_0 = arith.constant 0 : i32
    %c0_i32_1 = arith.constant 0 : i32
    return %c0_i32, %c0_i32_0 : i32, i32
  }
  func.func @transform_9(%arg0: i32) -> (i32, i32) {
    %c0_i32 = arith.constant 0 : i32
    %c0_i32_0 = arith.constant 0 : i32
    return %arg0, %c0_i32 : i32, i32
  }
}

module attributes {stable_mosaic.version = 11 : i64} {
  func.func @mapping_kernel(%arg0: i32, %arg1: memref<16x32xbf16, #tpu.memory_space<vmem>>, %arg2: memref<32x128xbf16, #tpu.memory_space<vmem>>, %arg3: memref<1x128xf32, #tpu.memory_space<vmem>>, %arg4: memref<128x128xbf16, #tpu.memory_space<vmem>>, %arg5: memref<1x128xf32, #tpu.memory_space<vmem>>, %arg6: memref<128x128xbf16, #tpu.memory_space<vmem>>, %arg7: memref<1x128xf32, #tpu.memory_space<vmem>>, %arg8: memref<128x128xbf16, #tpu.memory_space<vmem>>, %arg9: memref<1x128xf32, #tpu.memory_space<vmem>>, %arg10: memref<16x128xbf16, #tpu.memory_space<vmem>>) attributes {dimension_semantics = [#tpu.dimension_semantics<parallel>], iteration_bounds = array<i64: 1>, scalar_prefetch = 0 : i64, scratch_operands = 0 : i64, tpu.core_type = #tpu.core_type<tc>, window_params = [{transform_indices = @transform_0, window_bounds = array<i64: 16, 32>}, {pipeline_mode = #tpu.pipeline_mode<synchronous>, transform_indices = @transform_1, window_bounds = array<i64: 32, 128>}, {pipeline_mode = #tpu.pipeline_mode<synchronous>, transform_indices = @transform_2, window_bounds = array<i64: 1, 128>}, {pipeline_mode = #tpu.pipeline_mode<synchronous>, transform_indices = @transform_3, window_bounds = array<i64: 128, 128>}, {pipeline_mode = #tpu.pipeline_mode<synchronous>, transform_indices = @transform_4, window_bounds = array<i64: 1, 128>}, {pipeline_mode = #tpu.pipeline_mode<synchronous>, transform_indices = @transform_5, window_bounds = array<i64: 128, 128>}, {pipeline_mode = #tpu.pipeline_mode<synchronous>, transform_indices = @transform_6, window_bounds = array<i64: 1, 128>}, {pipeline_mode = #tpu.pipeline_mode<synchronous>, transform_indices = @transform_7, window_bounds = array<i64: 128, 128>}, {pipeline_mode = #tpu.pipeline_mode<synchronous>, transform_indices = @transform_8, window_bounds = array<i64: 1, 128>}, {transform_indices = @transform_9, window_bounds = array<i64: 16, 128>}]} {
    %c0 = arith.constant 0 : index
    %c0_0 = arith.constant 0 : index
    %0 = vector.load %arg1[%c0, %c0_0] : memref<16x32xbf16, #tpu.memory_space<vmem>>, vector<16x32xbf16>
    %c0_1 = arith.constant 0 : index
    %c0_2 = arith.constant 0 : index
    %1 = vector.load %arg2[%c0_1, %c0_2] : memref<32x128xbf16, #tpu.memory_space<vmem>>, vector<32x128xbf16>
    %cst = arith.constant dense<0.000000e+00> : vector<16x128xf32>
    %2 = tpu.matmul %0, %1, %cst {dimension_numbers = #tpu.dot_dimension_numbers<[1], [0], [0], [1], [0, 0, 1, 1], [], []>} : vector<16x32xbf16>, vector<32x128xbf16>, vector<16x128xf32> -> vector<16x128xf32>
    %c0_3 = arith.constant 0 : index
    %c0_4 = arith.constant 0 : index
    %3 = vector.load %arg3[%c0_3, %c0_4] : memref<1x128xf32, #tpu.memory_space<vmem>>, vector<1x128xf32>
    %4 = vector.broadcast %3 : vector<1x128xf32> to vector<16x128xf32>
    %5 = arith.addf %2, %4 : vector<16x128xf32>
    %cst_5 = arith.constant 2.000000e-01 : f32
    %6 = vector.broadcast %cst_5 : f32 to vector<16x128xf32>
    %7 = arith.mulf %5, %6 : vector<16x128xf32>
    %8 = arith.maximumf %5, %7 : vector<16x128xf32>
    %9 = arith.truncf %8 : vector<16x128xf32> to vector<16x128xbf16>
    %c0_6 = arith.constant 0 : index
    %c0_7 = arith.constant 0 : index
    %10 = vector.load %arg4[%c0_6, %c0_7] : memref<128x128xbf16, #tpu.memory_space<vmem>>, vector<128x128xbf16>
    %cst_8 = arith.constant dense<0.000000e+00> : vector<16x128xf32>
    %11 = tpu.matmul %9, %10, %cst_8 {dimension_numbers = #tpu.dot_dimension_numbers<[1], [0], [0], [1], [0, 0, 1, 1], [], []>} : vector<16x128xbf16>, vector<128x128xbf16>, vector<16x128xf32> -> vector<16x128xf32>
    %c0_9 = arith.constant 0 : index
    %c0_10 = arith.constant 0 : index
    %12 = vector.load %arg5[%c0_9, %c0_10] : memref<1x128xf32, #tpu.memory_space<vmem>>, vector<1x128xf32>
    %13 = vector.broadcast %12 : vector<1x128xf32> to vector<16x128xf32>
    %14 = arith.addf %11, %13 : vector<16x128xf32>
    %cst_11 = arith.constant 2.000000e-01 : f32
    %15 = vector.broadcast %cst_11 : f32 to vector<16x128xf32>
    %16 = arith.mulf %14, %15 : vector<16x128xf32>
    %17 = arith.maximumf %14, %16 : vector<16x128xf32>
    %18 = arith.truncf %17 : vector<16x128xf32> to vector<16x128xbf16>
    %c0_12 = arith.constant 0 : index
    %c0_13 = arith.constant 0 : index
    %19 = vector.load %arg6[%c0_12, %c0_13] : memref<128x128xbf16, #tpu.memory_space<vmem>>, vector<128x128xbf16>
    %cst_14 = arith.constant dense<0.000000e+00> : vector<16x128xf32>
    %20 = tpu.matmul %18, %19, %cst_14 {dimension_numbers = #tpu.dot_dimension_numbers<[1], [0], [0], [1], [0, 0, 1, 1], [], []>} : vector<16x128xbf16>, vector<128x128xbf16>, vector<16x128xf32> -> vector<16x128xf32>
    %c0_15 = arith.constant 0 : index
    %c0_16 = arith.constant 0 : index
    %21 = vector.load %arg7[%c0_15, %c0_16] : memref<1x128xf32, #tpu.memory_space<vmem>>, vector<1x128xf32>
    %22 = vector.broadcast %21 : vector<1x128xf32> to vector<16x128xf32>
    %23 = arith.addf %20, %22 : vector<16x128xf32>
    %cst_17 = arith.constant 2.000000e-01 : f32
    %24 = vector.broadcast %cst_17 : f32 to vector<16x128xf32>
    %25 = arith.mulf %23, %24 : vector<16x128xf32>
    %26 = arith.maximumf %23, %25 : vector<16x128xf32>
    %27 = arith.truncf %26 : vector<16x128xf32> to vector<16x128xbf16>
    %c0_18 = arith.constant 0 : index
    %c0_19 = arith.constant 0 : index
    %28 = vector.load %arg8[%c0_18, %c0_19] : memref<128x128xbf16, #tpu.memory_space<vmem>>, vector<128x128xbf16>
    %cst_20 = arith.constant dense<0.000000e+00> : vector<16x128xf32>
    %29 = tpu.matmul %27, %28, %cst_20 {dimension_numbers = #tpu.dot_dimension_numbers<[1], [0], [0], [1], [0, 0, 1, 1], [], []>} : vector<16x128xbf16>, vector<128x128xbf16>, vector<16x128xf32> -> vector<16x128xf32>
    %c0_21 = arith.constant 0 : index
    %c0_22 = arith.constant 0 : index
    %30 = vector.load %arg9[%c0_21, %c0_22] : memref<1x128xf32, #tpu.memory_space<vmem>>, vector<1x128xf32>
    %31 = vector.broadcast %30 : vector<1x128xf32> to vector<16x128xf32>
    %32 = arith.addf %29, %31 : vector<16x128xf32>
    %33 = arith.truncf %32 : vector<16x128xf32> to vector<16x128xbf16>
    %c0_23 = arith.constant 0 : index
    %c0_24 = arith.constant 0 : index
    %34 = vector.load %arg10[%c0_23, %c0_24] : memref<16x128xbf16, #tpu.memory_space<vmem>>, vector<16x128xbf16>
    tpu.vector_store %arg10[%c0_23, %c0_24], %33 {strides = array<i32>} : memref<16x128xbf16, #tpu.memory_space<vmem>>, vector<16x128xbf16>,
    return
  }
  func.func @transform_0(%arg0: i32) -> (i32, i32) {
    %c0_i32 = arith.constant 0 : i32
    %c0_i32_0 = arith.constant 0 : i32
    return %arg0, %c0_i32 : i32, i32
  }
  func.func @transform_1(%arg0: i32) -> (i32, i32) {
    %c0_i32 = arith.constant 0 : i32
    %c0_i32_0 = arith.constant 0 : i32
    %c0_i32_1 = arith.constant 0 : i32
    return %c0_i32, %c0_i32_0 : i32, i32
  }
  func.func @transform_2(%arg0: i32) -> (i32, i32) {
    %c0_i32 = arith.constant 0 : i32
    %c0_i32_0 = arith.constant 0 : i32
    %c0_i32_1 = arith.constant 0 : i32
    return %c0_i32, %c0_i32_0 : i32, i32
  }
  func.func @transform_3(%arg0: i32) -> (i32, i32) {
    %c0_i32 = arith.constant 0 : i32
    %c0_i32_0 = arith.constant 0 : i32
    %c0_i32_1 = arith.constant 0 : i32
    return %c0_i32, %c0_i32_0 : i32, i32
  }
  func.func @transform_4(%arg0: i32) -> (i32, i32) {
    %c0_i32 = arith.constant 0 : i32
    %c0_i32_0 = arith.constant 0 : i32
    %c0_i32_1 = arith.constant 0 : i32
    return %c0_i32, %c0_i32_0 : i32, i32
  }
  func.func @transform_5(%arg0: i32) -> (i32, i32) {
    %c0_i32 = arith.constant 0 : i32
    %c0_i32_0 = arith.constant 0 : i32
    %c0_i32_1 = arith.constant 0 : i32
    return %c0_i32, %c0_i32_0 : i32, i32
  }
  func.func @transform_6(%arg0: i32) -> (i32, i32) {
    %c0_i32 = arith.constant 0 : i32
    %c0_i32_0 = arith.constant 0 : i32
    %c0_i32_1 = arith.constant 0 : i32
    return %c0_i32, %c0_i32_0 : i32, i32
  }
  func.func @transform_7(%arg0: i32) -> (i32, i32) {
    %c0_i32 = arith.constant 0 : i32
    %c0_i32_0 = arith.constant 0 : i32
    %c0_i32_1 = arith.constant 0 : i32
    return %c0_i32, %c0_i32_0 : i32, i32
  }
  func.func @transform_8(%arg0: i32) -> (i32, i32) {
    %c0_i32 = arith.constant 0 : i32
    %c0_i32_0 = arith.constant 0 : i32
    %c0_i32_1 = arith.constant 0 : i32
    return %c0_i32, %c0_i32_0 : i32, i32
  }
  func.func @transform_9(%arg0: i32) -> (i32, i32) {
    %c0_i32 = arith.constant 0 : i32
    %c0_i32_0 = arith.constant 0 : i32
    return %arg0, %c0_i32 : i32, i32
  }
}

</mosaic_0001>

<llo_original>
// kernel: tpu_custom_call.1
$region0: #{tpu_custom_call.1}
  #allocation0 [shape = 'u32[]', space=smem, size = 0x4, offset = 0x4, fixed_abs, tag = 'smem constant byte address 0x4 - core index']
  #allocation1 [shape = 'u32[144,128]{1,0:T(1,128)}', space=vmem, size = 0x12000, scoped, tag = 'internal scratch']
  %s0 = inlined_call_operand.hbm [shape: bf16[16,32], index: 0, kind: input, shape index: {}]
  %s1 = inlined_call_operand.hbm [shape: bf16[32,128], index: 1, kind: input, shape index: {}]
  %s2 = inlined_call_operand.vmem [shape: f32[1,128], index: 2, kind: input, shape index: {}]
  %s3 = inlined_call_operand.hbm [shape: bf16[128,128], index: 3, kind: input, shape index: {}]
  %s4 = inlined_call_operand.vmem [shape: f32[1,128], index: 4, kind: input, shape index: {}]
  %s5 = inlined_call_operand.hbm [shape: bf16[128,128], index: 5, kind: input, shape index: {}]
  %s6 = inlined_call_operand.vmem [shape: f32[1,128], index: 6, kind: input, shape index: {}]
  %s7 = inlined_call_operand.hbm [shape: bf16[128,128], index: 7, kind: input, shape index: {}]
  %s8 = inlined_call_operand.vmem [shape: f32[1,128], index: 8, kind: input, shape index: {}]
  %s9 = inlined_call_operand.hbm [shape: bf16[16,128], index: 9, kind: output, shape index: {}]
  %s10 = sld [smem:[#allocation0]]
  $region66: #{tpu_custom_call.1} parent=0
    _
  %s12 = ssub.s32 1, %s10
  %s13 = scalar_select 0, %s12, %s10
  $region1: #{tpu_custom_call.1} parent=0
    #allocation2 [shape = 'u8[4096]{0}', space=vmem, size = 0x1000, scoped, tag = 'input window, operand 0, single buffered']
    #allocation3 [shape = 's32[1]{0}', space=sflag, size = 0x4, scoped, tag = 'scoped memory for tpu_custom_call.1']
    #allocation4 [shape = 's32[1]{0}', space=sflag, size = 0x4, scoped, tag = 'scoped memory for tpu_custom_call.1']
    #allocation5 [shape = 'u8[8192]{0}', space=vmem, size = 0x2000, scoped, tag = 'input window, operand 1, single buffered']
    #allocation6 [shape = 's32[1]{0}', space=sflag, size = 0x4, scoped, tag = 'scoped memory for tpu_custom_call.1']
    #allocation7 [shape = 'u8[32768]{0}', space=vmem, size = 0x8000, scoped, tag = 'input window, operand 3, single buffered']
    #allocation8 [shape = 'u8[32768]{0}', space=vmem, size = 0x8000, scoped, tag = 'input window, operand 5, single buffered']
    #allocation9 [shape = 's32[1]{0}', space=sflag, size = 0x4, scoped, tag = 'scoped memory for tpu_custom_call.1']
    #allocation10 [shape = 'u8[32768]{0}', space=vmem, size = 0x8000, scoped, tag = 'input window, operand 7, single buffered']
    #allocation11 [shape = 'u8[4096]{0}', space=vmem, size = 0x1000, scoped, tag = 'output window, operand 0, single buffered']
    %14 = vsyncpa [#allocation3], 0
    %15 = vsyncpa [#allocation6], 0
    %16 = vsyncpa [#allocation9], 0
    %17 = vsyncpa [#allocation4], 0
    // Predicated region
    $region2: #{tpu_custom_call.1} parent=1 // pred_check
      _
    $region3: #{tpu_custom_call.1} parent=1 // pred_check_branch
      %19 = sbr.rel (0) target = $region5
    $region4: #{tpu_custom_call.1} parent=1 // pred_region
      %s21 = ssub.s32 128, 128
      %22 = vsyncadd [#allocation3], %s21
      %s23 = sshll.u32 [#allocation2], 4
      %s24 = int_to_ptr.vmem [resolvable:$true] %s23
      %29 = dma.hbm_to_vmem [thread:$0]  %s0, 128, %s24, [#allocation3], 64, 64, 4
    $region5: #{tpu_custom_call.1} parent=1 // pred_fallthru
      _
    // Predicated region
    $region6: #{tpu_custom_call.1} parent=1 // pred_check
      _
    $region7: #{tpu_custom_call.1} parent=1 // pred_check_branch
      %31 = sbr.rel (0) target = $region9
    $region8: #{tpu_custom_call.1} parent=1 // pred_region
      %s33 = ssub.s32 256, 256
      %34 = vsyncadd [#allocation6], %s33
      %s35 = sshll.u32 [#allocation5], 4
      %s36 = int_to_ptr.vmem [resolvable:$true] %s35
      %41 = dma.hbm_to_vmem [thread:$0]  %s1, 256, %s36, [#allocation6], 64, 64, 4
    $region9: #{tpu_custom_call.1} parent=1 // pred_fallthru
      _
    // Predicated region
    $region10: #{tpu_custom_call.1} parent=1 // pred_check
      _
    $region11: #{tpu_custom_call.1} parent=1 // pred_check_branch
      %43 = sbr.rel (0) target = $region13
    $region12: #{tpu_custom_call.1} parent=1 // pred_region
      _
    $region13: #{tpu_custom_call.1} parent=1 // pred_fallthru
      _
    // Predicated region
    $region14: #{tpu_custom_call.1} parent=1 // pred_check
      _
    $region15: #{tpu_custom_call.1} parent=1 // pred_check_branch
      %45 = sbr.rel (0) target = $region17
    $region16: #{tpu_custom_call.1} parent=1 // pred_region
      %s47 = ssub.s32 1024, 1024
      %48 = vsyncadd [#allocation6], %s47
      %s49 = sshll.u32 [#allocation7], 4
      %s50 = int_to_ptr.vmem [resolvable:$true] %s49
      %55 = dma.hbm_to_vmem [thread:$0]  %s3, 1024, %s50, [#allocation6], 64, 64, 4
    $region17: #{tpu_custom_call.1} parent=1 // pred_fallthru
      _
    // Predicated region
    $region18: #{tpu_custom_call.1} parent=1 // pred_check
      _
    $region19: #{tpu_custom_call.1} parent=1 // pred_check_branch
      %57 = sbr.rel (0) target = $region21
    $region20: #{tpu_custom_call.1} parent=1 // pred_region
      _
    $region21: #{tpu_custom_call.1} parent=1 // pred_fallthru
      _
    // Predicated region
    $region22: #{tpu_custom_call.1} parent=1 // pred_check
      _
    $region23: #{tpu_custom_call.1} parent=1 // pred_check_branch
      %59 = sbr.rel (0) target = $region25
    $region24: #{tpu_custom_call.1} parent=1 // pred_region
      %s61 = ssub.s32 1024, 1024
      %62 = vsyncadd [#allocation9], %s61
      %s63 = sshll.u32 [#allocation8], 4
      %s64 = int_to_ptr.vmem [resolvable:$true] %s63
      %69 = dma.hbm_to_vmem [thread:$0]  %s5, 1024, %s64, [#allocation9], 64, 64, 4
    $region25: #{tpu_custom_call.1} parent=1 // pred_fallthru
      _
    // Predicated region
    $region26: #{tpu_custom_call.1} parent=1 // pred_check
      _
    $region27: #{tpu_custom_call.1} parent=1 // pred_check_branch
      %71 = sbr.rel (0) target = $region29
    $region28: #{tpu_custom_call.1} parent=1 // pred_region
      _
    $region29: #{tpu_custom_call.1} parent=1 // pred_fallthru
      _
    // Predicated region
    $region30: #{tpu_custom_call.1} parent=1 // pred_check
      _
    $region31: #{tpu_custom_call.1} parent=1 // pred_check_branch
      %73 = sbr.rel (0) target = $region33
    $region32: #{tpu_custom_call.1} parent=1 // pred_region
      %s75 = ssub.s32 1024, 1024
      %76 = vsyncadd [#allocation9], %s75
      %s77 = sshll.u32 [#allocation10], 4
      %s78 = int_to_ptr.vmem [resolvable:$true] %s77
      %83 = dma.hbm_to_vmem [thread:$0]  %s7, 1024, %s78, [#allocation9], 64, 64, 4
    $region33: #{tpu_custom_call.1} parent=1 // pred_fallthru
      _
    // Predicated region
    $region34: #{tpu_custom_call.1} parent=1 // pred_check
      _
    $region35: #{tpu_custom_call.1} parent=1 // pred_check_branch
      %85 = sbr.rel (0) target = $region37
    $region36: #{tpu_custom_call.1} parent=1 // pred_region
      _
    $region37: #{tpu_custom_call.1} parent=1 // pred_fallthru
      _
    // Predicated region
    $region38: #{tpu_custom_call.1} parent=1 // pred_check
      _
    $region39: #{tpu_custom_call.1} parent=1 // pred_check_branch
      %87 = sbr.rel (0) target = $region41
    $region40: #{tpu_custom_call.1} parent=1 // pred_region
      %88 = dma.done [#allocation3], 128
    $region41: #{tpu_custom_call.1} parent=1 // pred_fallthru
      _
    // Predicated region
    $region42: #{tpu_custom_call.1} parent=1 // pred_check
      _
    $region43: #{tpu_custom_call.1} parent=1 // pred_check_branch
      %90 = sbr.rel (0) target = $region45
    $region44: #{tpu_custom_call.1} parent=1 // pred_region
      %91 = dma.done [#allocation6], 256
    $region45: #{tpu_custom_call.1} parent=1 // pred_fallthru
      _
    // Predicated region
    $region46: #{tpu_custom_call.1} parent=1 // pred_check
      _
    $region47: #{tpu_custom_call.1} parent=1 // pred_check_branch
      %93 = sbr.rel (0) target = $region49
    $region48: #{tpu_custom_call.1} parent=1 // pred_region
      %94 = dma.done [#allocation6], 1024
    $region49: #{tpu_custom_call.1} parent=1 // pred_fallthru
      _
    // Predicated region
    $region50: #{tpu_custom_call.1} parent=1 // pred_check
      _
    $region51: #{tpu_custom_call.1} parent=1 // pred_check_branch
      %96 = sbr.rel (0) target = $region53
    $region52: #{tpu_custom_call.1} parent=1 // pred_region
      %97 = dma.done [#allocation9], 1024
    $region53: #{tpu_custom_call.1} parent=1 // pred_fallthru
      _
    // Predicated region
    $region54: #{tpu_custom_call.1} parent=1 // pred_check
      _
    $region55: #{tpu_custom_call.1} parent=1 // pred_check_branch
      %99 = sbr.rel (0) target = $region57
    $region56: #{tpu_custom_call.1} parent=1 // pred_region
      %100 = dma.done [#allocation9], 1024
    $region57: #{tpu_custom_call.1} parent=1 // pred_fallthru
      _
    %v102 = vld [vmem:[#allocation2] sm:$0xf]
    %v103 = vld [vmem:[#allocation2 + $0x4] sm:$0xf]
    %v104 = vld [vmem:[#allocation5] sm:$0xf]
    %v105 = vld [vmem:[#allocation5 + $0x4] sm:$0xf]
    %v106 = vld [vmem:[#allocation5 + $0x8] sm:$0xf]
    %v107 = vld [vmem:[#allocation5 + $0xc] sm:$0xf]
    %v108 = vld [vmem:[%s2] sm:$0x1]
    %v110 = vlaneseq
    %v111 = vshrl.u32 %v110, 7
    %v112 = vsub.s32 0, %v111
    %v113 = vrot.slane %v108, %v112
    %v117 = vunpack.c.l.b16 %v102
    %v118 = vunpack.c.l.b16 %v103
    %v119 = vpack.c.b16 %v118, %v117
    %v124 = vunpack.c.l.b16 %v104
    %v125 = vunpack.c.l.b16 %v105
    %v126 = vunpack.c.l.b16 %v106
    %v127 = vunpack.c.l.b16 %v107
    %v128 = vpack.c.b16 %v125, %v124
    %v129 = vpack.c.b16 %v127, %v126
    %vm132 = vcmask 261120
    %v134 = vsel %vm132, %v119, 0
    %136 = vmatprep.subr.bf16.mxu0 0
    %137 = vmatpush1.bf16.msra.mxu0 0
    %138 = vmatprep.subr.bf16.mxu0 0
    %139 = vmatpush1.bf16.msra.mxu0 0
    %140 = vmatprep.subr.bf16.mxu0 0
    %141 = vmatpush1.bf16.msra.mxu0 0
    %142 = vmatprep.subr.bf16.mxu0 0
    %143 = vmatpush1.bf16.msra.mxu0 0
    %144 = vmatprep.subr.bf16.mxu0 0
    %145 = vmatpush1.bf16.msra.mxu0 0
    %146 = vmatprep.subr.bf16.mxu0 0
    %147 = vmatpush1.bf16.msra.mxu0 0
    %148 = vmatprep.subr.bf16.mxu0 0
    %149 = vmatpush1.bf16.msra.mxu0 %v129
    %150 = vmatprep.subr.bf16.mxu0 0
    %151 = vmatpush1.bf16.msra.mxu0 %v128
    %152 = vmatprep.subr.bf16.mxu0 0
    %153 = vmatpush2.bf16.msra.mxu0 0
    %154 = vmatprep.subr.bf16.mxu0 0
    %155 = vmatpush2.bf16.msra.mxu0 0
    %156 = vmatprep.subr.bf16.mxu0 0
    %157 = vmatpush2.bf16.msra.mxu0 0
    %158 = vmatprep.subr.bf16.mxu0 0
    %159 = vmatpush2.bf16.msra.mxu0 0
    %160 = vmatprep.subr.bf16.mxu0 0
    %161 = vmatpush2.bf16.msra.mxu0 0
    %162 = vmatprep.subr.bf16.mxu0 0
    %163 = vmatpush2.bf16.msra.mxu0 0
    %164 = vmatprep.subr.bf16.mxu0 0
    %165 = vmatpush2.bf16.msra.mxu0 0
    %166 = vmatprep.subr.bf16.mxu0 0
    %167 = vmatpush2.bf16.msra.mxu0 0
    %168 = vmatprep.mubr.bf16.mxu0 0
    %169 = vmatmul.mubr.bf16.gmra.mxu0 %v134
    %v170 = vpop.f32.mrf.mxu0
    %v171 = vadd.f32 %v113, %v170
    %v172 = vpop.f32.mrf.mxu0
    %v173 = vpop.f32.mrf.mxu0
    %v174 = vadd.f32 %v113, %v173
    %v175 = vpop.f32.mrf.mxu0
    %176 = vdwg.mxu0
    %v177 = vmul.f32 %v171, 0.2
    %v178 = vmul.f32 %v174, 0.2
    %v179 = vmax.f32 %v171, %v177
    %v180 = vmax.f32 %v174, %v178
    %v181 = vpack.c.bf16 %v180, %v179
    %v182 = vld [vmem:[#allocation7] sm:$0xf]
    %v183 = vld [vmem:[#allocation7 + $0x4] sm:$0xf]
    %v184 = vld [vmem:[#allocation7 + $0x8] sm:$0xf]
    %v185 = vld [vmem:[#allocation7 + $0xc] sm:$0xf]
    %v186 = vld [vmem:[#allocation7 + $0x10] sm:$0xf]
    %v187 = vld [vmem:[#allocation7 + $0x14] sm:$0xf]
    %v188 = vld [vmem:[#allocation7 + $0x18] sm:$0xf]
    %v189 = vld [vmem:[#allocation7 + $0x1c] sm:$0xf]
    %v190 = vld [vmem:[#allocation7 + $0x20] sm:$0xf]
    %v191 = vld [vmem:[#allocation7 + $0x24] sm:$0xf]
    %v192 = vld [vmem:[#allocation7 + $0x28] sm:$0xf]
    %v193 = vld [vmem:[#allocation7 + $0x2c] sm:$0xf]
    %v194 = vld [vmem:[#allocation7 + $0x30] sm:$0xf]
    %v195 = vld [vmem:[#allocation7 + $0x34] sm:$0xf]
    %v196 = vld [vmem:[#allocation7 + $0x38] sm:$0xf]
    %v197 = vld [vmem:[#allocation7 + $0x3c] sm:$0xf]
    %v198 = vld [vmem:[%s4] sm:$0x1]
    %v200 = vlaneseq
    %v201 = vshrl.u32 %v200, 7
    %v202 = vsub.s32 0, %v201
    %v203 = vrot.slane %v198, %v202
    %v221 = vunpack.c.l.b16 %v182
    %v222 = vunpack.c.l.b16 %v183
    %v223 = vunpack.c.l.b16 %v184
    %v224 = vunpack.c.l.b16 %v185
    %v225 = vunpack.c.l.b16 %v186
    %v226 = vunpack.c.l.b16 %v187
    %v227 = vunpack.c.l.b16 %v188
    %v228 = vunpack.c.l.b16 %v189
    %v229 = vunpack.c.l.b16 %v190
    %v230 = vunpack.c.l.b16 %v191
    %v231 = vunpack.c.l.b16 %v192
    %v232 = vunpack.c.l.b16 %v193
    %v233 = vunpack.c.l.b16 %v194
    %v234 = vunpack.c.l.b16 %v195
    %v235 = vunpack.c.l.b16 %v196
    %v236 = vunpack.c.l.b16 %v197
    %v237 = vpack.c.b16 %v222, %v221
    %v238 = vpack.c.b16 %v224, %v223
    %v239 = vpack.c.b16 %v226, %v225
    %v240 = vpack.c.b16 %v228, %v227
    %v241 = vpack.c.b16 %v230, %v229
    %v242 = vpack.c.b16 %v232, %v231
    %v243 = vpack.c.b16 %v234, %v233
    %v244 = vpack.c.b16 %v236, %v235
    %253 = vmatprep.subr.bf16.mxu0 0
    %254 = vmatpush1.bf16.msra.mxu0 %v244
    %255 = vmatprep.subr.bf16.mxu0 0
    %256 = vmatpush1.bf16.msra.mxu0 %v243
    %257 = vmatprep.subr.bf16.mxu0 0
    %258 = vmatpush1.bf16.msra.mxu0 %v242
    %259 = vmatprep.subr.bf16.mxu0 0
    %260 = vmatpush1.bf16.msra.mxu0 %v241
    %261 = vmatprep.subr.bf16.mxu0 0
    %262 = vmatpush1.bf16.msra.mxu0 %v240
    %263 = vmatprep.subr.bf16.mxu0 0
    %264 = vmatpush1.bf16.msra.mxu0 %v239
    %265 = vmatprep.subr.bf16.mxu0 0
    %266 = vmatpush1.bf16.msra.mxu0 %v238
    %267 = vmatprep.subr.bf16.mxu0 0
    %268 = vmatpush1.bf16.msra.mxu0 %v237
    %269 = vmatprep.subr.bf16.mxu0 0
    %270 = vmatpush2.bf16.msra.mxu0 0
    %271 = vmatprep.subr.bf16.mxu0 0
    %272 = vmatpush2.bf16.msra.mxu0 0
    %273 = vmatprep.subr.bf16.mxu0 0
    %274 = vmatpush2.bf16.msra.mxu0 0
    %275 = vmatprep.subr.bf16.mxu0 0
    %276 = vmatpush2.bf16.msra.mxu0 0
    %277 = vmatprep.subr.bf16.mxu0 0
    %278 = vmatpush2.bf16.msra.mxu0 0
    %279 = vmatprep.subr.bf16.mxu0 0
    %280 = vmatpush2.bf16.msra.mxu0 0
    %281 = vmatprep.subr.bf16.mxu0 0
    %282 = vmatpush2.bf16.msra.mxu0 0
    %283 = vmatprep.subr.bf16.mxu0 0
    %284 = vmatpush2.bf16.msra.mxu0 0
    %285 = vmatprep.mubr.bf16.mxu0 0
    %286 = vmatmul.mubr.bf16.gmra.mxu0 %v181
    %v287 = vpop.f32.mrf.mxu0
    %v288 = vadd.f32 %v203, %v287
    %v289 = vpop.f32.mrf.mxu0
    %v290 = vpop.f32.mrf.mxu0
    %v291 = vadd.f32 %v203, %v290
    %v292 = vpop.f32.mrf.mxu0
    %293 = vdwg.mxu0
    %v294 = vmul.f32 %v288, 0.2
    %v295 = vmul.f32 %v291, 0.2
    %v296 = vmax.f32 %v288, %v294
    %v297 = vmax.f32 %v291, %v295
    %v298 = vpack.c.bf16 %v297, %v296
    %v299 = vld [vmem:[#allocation8] sm:$0xf]
    %v300 = vld [vmem:[#allocation8 + $0x4] sm:$0xf]
    %v301 = vld [vmem:[#allocation8 + $0x8] sm:$0xf]
    %v302 = vld [vmem:[#allocation8 + $0xc] sm:$0xf]
    %v303 = vld [vmem:[#allocation8 + $0x10] sm:$0xf]
    %v304 = vld [vmem:[#allocation8 + $0x14] sm:$0xf]
    %v305 = vld [vmem:[#allocation8 + $0x18] sm:$0xf]
    %v306 = vld [vmem:[#allocation8 + $0x1c] sm:$0xf]
    %v307 = vld [vmem:[#allocation8 + $0x20] sm:$0xf]
    %v308 = vld [vmem:[#allocation8 + $0x24] sm:$0xf]
    %v309 = vld [vmem:[#allocation8 + $0x28] sm:$0xf]
    %v310 = vld [vmem:[#allocation8 + $0x2c] sm:$0xf]
    %v311 = vld [vmem:[#allocation8 + $0x30] sm:$0xf]
    %v312 = vld [vmem:[#allocation8 + $0x34] sm:$0xf]
    %v313 = vld [vmem:[#allocation8 + $0x38] sm:$0xf]
    %v314 = vld [vmem:[#allocation8 + $0x3c] sm:$0xf]
    %v315 = vld [vmem:[%s6] sm:$0x1]
    %v317 = vlaneseq
    %v318 = vshrl.u32 %v317, 7
    %v319 = vsub.s32 0, %v318
    %v320 = vrot.slane %v315, %v319
    %v338 = vunpack.c.l.b16 %v299
    %v339 = vunpack.c.l.b16 %v300
    %v340 = vunpack.c.l.b16 %v301
    %v341 = vunpack.c.l.b16 %v302
    %v342 = vunpack.c.l.b16 %v303
    %v343 = vunpack.c.l.b16 %v304
    %v344 = vunpack.c.l.b16 %v305
    %v345 = vunpack.c.l.b16 %v306
    %v346 = vunpack.c.l.b16 %v307
    %v347 = vunpack.c.l.b16 %v308
    %v348 = vunpack.c.l.b16 %v309
    %v349 = vunpack.c.l.b16 %v310
    %v350 = vunpack.c.l.b16 %v311
    %v351 = vunpack.c.l.b16 %v312
    %v352 = vunpack.c.l.b16 %v313
    %v353 = vunpack.c.l.b16 %v314
    %v354 = vpack.c.b16 %v339, %v338
    %v355 = vpack.c.b16 %v341, %v340
    %v356 = vpack.c.b16 %v343, %v342
    %v357 = vpack.c.b16 %v345, %v344
    %v358 = vpack.c.b16 %v347, %v346
    %v359 = vpack.c.b16 %v349, %v348
    %v360 = vpack.c.b16 %v351, %v350
    %v361 = vpack.c.b16 %v353, %v352
    %370 = vmatprep.subr.bf16.mxu0 0
    %371 = vmatpush1.bf16.msra.mxu0 %v361
    %372 = vmatprep.subr.bf16.mxu0 0
    %373 = vmatpush1.bf16.msra.mxu0 %v360
    %374 = vmatprep.subr.bf16.mxu0 0
    %375 = vmatpush1.bf16.msra.mxu0 %v359
    %376 = vmatprep.subr.bf16.mxu0 0
    %377 = vmatpush1.bf16.msra.mxu0 %v358
    %378 = vmatprep.subr.bf16.mxu0 0
    %379 = vmatpush1.bf16.msra.mxu0 %v357
    %380 = vmatprep.subr.bf16.mxu0 0
    %381 = vmatpush1.bf16.msra.mxu0 %v356
    %382 = vmatprep.subr.bf16.mxu0 0
    %383 = vmatpush1.bf16.msra.mxu0 %v355
    %384 = vmatprep.subr.bf16.mxu0 0
    %385 = vmatpush1.bf16.msra.mxu0 %v354
    %386 = vmatprep.subr.bf16.mxu0 0
    %387 = vmatpush2.bf16.msra.mxu0 0
    %388 = vmatprep.subr.bf16.mxu0 0
    %389 = vmatpush2.bf16.msra.mxu0 0
    %390 = vmatprep.subr.bf16.mxu0 0
    %391 = vmatpush2.bf16.msra.mxu0 0
    %392 = vmatprep.subr.bf16.mxu0 0
    %393 = vmatpush2.bf16.msra.mxu0 0
    %394 = vmatprep.subr.bf16.mxu0 0
    %395 = vmatpush2.bf16.msra.mxu0 0
    %396 = vmatprep.subr.bf16.mxu0 0
    %397 = vmatpush2.bf16.msra.mxu0 0
    %398 = vmatprep.subr.bf16.mxu0 0
    %399 = vmatpush2.bf16.msra.mxu0 0
    %400 = vmatprep.subr.bf16.mxu0 0
    %401 = vmatpush2.bf16.msra.mxu0 0
    %402 = vmatprep.mubr.bf16.mxu0 0
    %403 = vmatmul.mubr.bf16.gmra.mxu0 %v298
    %v404 = vpop.f32.mrf.mxu0
    %v405 = vadd.f32 %v320, %v404
    %v406 = vpop.f32.mrf.mxu0
    %v407 = vpop.f32.mrf.mxu0
    %v408 = vadd.f32 %v320, %v407
    %v409 = vpop.f32.mrf.mxu0
    %410 = vdwg.mxu0
    %v411 = vmul.f32 %v405, 0.2
    %v412 = vmul.f32 %v408, 0.2
    %v413 = vmax.f32 %v405, %v411
    %v414 = vmax.f32 %v408, %v412
    %v415 = vpack.c.bf16 %v414, %v413
    %v416 = vld [vmem:[#allocation10] sm:$0xf]
    %v417 = vld [vmem:[#allocation10 + $0x4] sm:$0xf]
    %v418 = vld [vmem:[#allocation10 + $0x8] sm:$0xf]
    %v419 = vld [vmem:[#allocation10 + $0xc] sm:$0xf]
    %v420 = vld [vmem:[#allocation10 + $0x10] sm:$0xf]
    %v421 = vld [vmem:[#allocation10 + $0x14] sm:$0xf]
    %v422 = vld [vmem:[#allocation10 + $0x18] sm:$0xf]
    %v423 = vld [vmem:[#allocation10 + $0x1c] sm:$0xf]
    %v424 = vld [vmem:[#allocation10 + $0x20] sm:$0xf]
    %v425 = vld [vmem:[#allocation10 + $0x24] sm:$0xf]
    %v426 = vld [vmem:[#allocation10 + $0x28] sm:$0xf]
    %v427 = vld [vmem:[#allocation10 + $0x2c] sm:$0xf]
    %v428 = vld [vmem:[#allocation10 + $0x30] sm:$0xf]
    %v429 = vld [vmem:[#allocation10 + $0x34] sm:$0xf]
    %v430 = vld [vmem:[#allocation10 + $0x38] sm:$0xf]
    %v431 = vld [vmem:[#allocation10 + $0x3c] sm:$0xf]
    %v432 = vld [vmem:[%s8] sm:$0x1]
    %v434 = vlaneseq
    %v435 = vshrl.u32 %v434, 7
    %v436 = vsub.s32 0, %v435
    %v437 = vrot.slane %v432, %v436
    %v455 = vunpack.c.l.b16 %v416
    %v456 = vunpack.c.l.b16 %v417
    %v457 = vunpack.c.l.b16 %v418
    %v458 = vunpack.c.l.b16 %v419
    %v459 = vunpack.c.l.b16 %v420
    %v460 = vunpack.c.l.b16 %v421
    %v461 = vunpack.c.l.b16 %v422
    %v462 = vunpack.c.l.b16 %v423
    %v463 = vunpack.c.l.b16 %v424
    %v464 = vunpack.c.l.b16 %v425
    %v465 = vunpack.c.l.b16 %v426
    %v466 = vunpack.c.l.b16 %v427
    %v467 = vunpack.c.l.b16 %v428
    %v468 = vunpack.c.l.b16 %v429
    %v469 = vunpack.c.l.b16 %v430
    %v470 = vunpack.c.l.b16 %v431
    %v471 = vpack.c.b16 %v456, %v455
    %v472 = vpack.c.b16 %v458, %v457
    %v473 = vpack.c.b16 %v460, %v459
    %v474 = vpack.c.b16 %v462, %v461
    %v475 = vpack.c.b16 %v464, %v463
    %v476 = vpack.c.b16 %v466, %v465
    %v477 = vpack.c.b16 %v468, %v467
    %v478 = vpack.c.b16 %v470, %v469
    %487 = vmatprep.subr.bf16.mxu0 0
    %488 = vmatpush1.bf16.msra.mxu0 %v478
    %489 = vmatprep.subr.bf16.mxu0 0
    %490 = vmatpush1.bf16.msra.mxu0 %v477
    %491 = vmatprep.subr.bf16.mxu0 0
    %492 = vmatpush1.bf16.msra.mxu0 %v476
    %493 = vmatprep.subr.bf16.mxu0 0
    %494 = vmatpush1.bf16.msra.mxu0 %v475
    %495 = vmatprep.subr.bf16.mxu0 0
    %496 = vmatpush1.bf16.msra.mxu0 %v474
    %497 = vmatprep.subr.bf16.mxu0 0
    %498 = vmatpush1.bf16.msra.mxu0 %v473
    %499 = vmatprep.subr.bf16.mxu0 0
    %500 = vmatpush1.bf16.msra.mxu0 %v472
    %501 = vmatprep.subr.bf16.mxu0 0
    %502 = vmatpush1.bf16.msra.mxu0 %v471
    %503 = vmatprep.subr.bf16.mxu0 0
    %504 = vmatpush2.bf16.msra.mxu0 0
    %505 = vmatprep.subr.bf16.mxu0 0
    %506 = vmatpush2.bf16.msra.mxu0 0
    %507 = vmatprep.subr.bf16.mxu0 0
    %508 = vmatpush2.bf16.msra.mxu0 0
    %509 = vmatprep.subr.bf16.mxu0 0
    %510 = vmatpush2.bf16.msra.mxu0 0
    %511 = vmatprep.subr.bf16.mxu0 0
    %512 = vmatpush2.bf16.msra.mxu0 0
    %513 = vmatprep.subr.bf16.mxu0 0
    %514 = vmatpush2.bf16.msra.mxu0 0
    %515 = vmatprep.subr.bf16.mxu0 0
    %516 = vmatpush2.bf16.msra.mxu0 0
    %517 = vmatprep.subr.bf16.mxu0 0
    %518 = vmatpush2.bf16.msra.mxu0 0
    %519 = vmatprep.mubr.bf16.mxu0 0
    %520 = vmatmul.mubr.bf16.gmra.mxu0 %v415
    %v521 = vpop.f32.mrf.mxu0
    %v522 = vadd.f32 %v437, %v521
    %v523 = vpop.f32.mrf.mxu0
    %v524 = vpop.f32.mrf.mxu0
    %v525 = vadd.f32 %v437, %v524
    %v526 = vpop.f32.mrf.mxu0
    %527 = vdwg.mxu0
    %v528 = vpack.c.bf16 %v525, %v522
    %v530 = vunpack.c.l.b16 %v528
    %v531 = vunpack.c.h.b16 %v528
    %v532 = vpack.c.b16 %v530, %v530
    %v533 = vpack.c.b16 %v531, %v531
    %536 = vst [vmem:[#allocation11] sm:$0xf] %v532
    %537 = vst [vmem:[#allocation11 + $0x4] sm:$0xf] %v533
    // Predicated region
    $region58: #{tpu_custom_call.1} parent=1 // pred_check
      _
    $region59: #{tpu_custom_call.1} parent=1 // pred_check_branch
      %539 = sbr.rel (0) target = $region61
    $region60: #{tpu_custom_call.1} parent=1 // pred_region
      %s541 = ssub.s32 128, 128
      %542 = vsyncadd [#allocation4], %s541
      %s543 = sshll.u32 [#allocation11], 4
      %s544 = int_to_ptr.vmem [resolvable:$true] %s543
      %549 = dma.vmem_to_hbm [thread:$0]  %s544, 128, %s9, [#allocation4], 64, 64, 4
    $region61: #{tpu_custom_call.1} parent=1 // pred_fallthru
      _
    // Predicated region
    $region62: #{tpu_custom_call.1} parent=1 // pred_check
      _
    $region63: #{tpu_custom_call.1} parent=1 // pred_check_branch
      %551 = sbr.rel (0) target = $region65
    $region64: #{tpu_custom_call.1} parent=1 // pred_region
      %552 = dma.done [#allocation4], 128
    $region65: #{tpu_custom_call.1} parent=1 // pred_fallthru
      _
    %553 = vsyncpa [#allocation3], 1
    %554 = vsyncpa [#allocation6], 1
    %555 = vsyncpa [#allocation9], 1
    %556 = vsyncpa [#allocation4], 1

// kernel: tpu_custom_call.1
$region0: #{tpu_custom_call.1}
  #allocation0 [shape = 'u32[]', space=smem, size = 0x4, offset = 0x4, fixed_abs, tag = 'smem constant byte address 0x4 - core index']
  #allocation1 [shape = 'u32[144,128]{1,0:T(1,128)}', space=vmem, size = 0x12000, scoped, tag = 'internal scratch']
  %s0 = inlined_call_operand.hbm [shape: bf16[16,32], index: 0, kind: input, shape index: {}]
  %s1 = inlined_call_operand.hbm [shape: bf16[32,128], index: 1, kind: input, shape index: {}]
  %s2 = inlined_call_operand.vmem [shape: f32[1,128], index: 2, kind: input, shape index: {}]
  %s3 = inlined_call_operand.hbm [shape: bf16[128,128], index: 3, kind: input, shape index: {}]
  %s4 = inlined_call_operand.vmem [shape: f32[1,128], index: 4, kind: input, shape index: {}]
  %s5 = inlined_call_operand.hbm [shape: bf16[128,128], index: 5, kind: input, shape index: {}]
  %s6 = inlined_call_operand.vmem [shape: f32[1,128], index: 6, kind: input, shape index: {}]
  %s7 = inlined_call_operand.hbm [shape: bf16[128,128], index: 7, kind: input, shape index: {}]
  %s8 = inlined_call_operand.vmem [shape: f32[1,128], index: 8, kind: input, shape index: {}]
  %s9 = inlined_call_operand.hbm [shape: bf16[16,128], index: 9, kind: output, shape index: {}]
  %s10 = sld [smem:[#allocation0]]
  $region66: #{tpu_custom_call.1} parent=0
    _
  %s12 = ssub.s32 1, %s10
  %s13 = scalar_select 0, %s12, %s10
  $region1: #{tpu_custom_call.1} parent=0
    #allocation2 [shape = 'u8[4096]{0}', space=vmem, size = 0x1000, scoped, tag = 'input window, operand 0, single buffered']
    #allocation3 [shape = 's32[1]{0}', space=sflag, size = 0x4, scoped, tag = 'scoped memory for tpu_custom_call.1']
    #allocation4 [shape = 's32[1]{0}', space=sflag, size = 0x4, scoped, tag = 'scoped memory for tpu_custom_call.1']
    #allocation5 [shape = 'u8[8192]{0}', space=vmem, size = 0x2000, scoped, tag = 'input window, operand 1, single buffered']
    #allocation6 [shape = 's32[1]{0}', space=sflag, size = 0x4, scoped, tag = 'scoped memory for tpu_custom_call.1']
    #allocation7 [shape = 'u8[32768]{0}', space=vmem, size = 0x8000, scoped, tag = 'input window, operand 3, single buffered']
    #allocation8 [shape = 'u8[32768]{0}', space=vmem, size = 0x8000, scoped, tag = 'input window, operand 5, single buffered']
    #allocation9 [shape = 's32[1]{0}', space=sflag, size = 0x4, scoped, tag = 'scoped memory for tpu_custom_call.1']
    #allocation10 [shape = 'u8[32768]{0}', space=vmem, size = 0x8000, scoped, tag = 'input window, operand 7, single buffered']
    #allocation11 [shape = 'u8[4096]{0}', space=vmem, size = 0x1000, scoped, tag = 'output window, operand 0, single buffered']
    %14 = vsyncpa [#allocation3], 0
    %15 = vsyncpa [#allocation6], 0
    %16 = vsyncpa [#allocation9], 0
    %17 = vsyncpa [#allocation4], 0
    // Predicated region
    $region2: #{tpu_custom_call.1} parent=1 // pred_check
      _
    $region3: #{tpu_custom_call.1} parent=1 // pred_check_branch
      %19 = sbr.rel (0) target = $region5
    $region4: #{tpu_custom_call.1} parent=1 // pred_region
      %s21 = ssub.s32 128, 128
      %22 = vsyncadd [#allocation3], %s21
      %s23 = sshll.u32 [#allocation2], 4
      %s24 = int_to_ptr.vmem [resolvable:$true] %s23
      %29 = dma.hbm_to_vmem [thread:$0]  %s0, 128, %s24, [#allocation3], 64, 64, 4
    $region5: #{tpu_custom_call.1} parent=1 // pred_fallthru
      _
    // Predicated region
    $region6: #{tpu_custom_call.1} parent=1 // pred_check
      _
    $region7: #{tpu_custom_call.1} parent=1 // pred_check_branch
      %31 = sbr.rel (0) target = $region9
    $region8: #{tpu_custom_call.1} parent=1 // pred_region
      %s33 = ssub.s32 256, 256
      %34 = vsyncadd [#allocation6], %s33
      %s35 = sshll.u32 [#allocation5], 4
      %s36 = int_to_ptr.vmem [resolvable:$true] %s35
      %41 = dma.hbm_to_vmem [thread:$0]  %s1, 256, %s36, [#allocation6], 64, 64, 4
    $region9: #{tpu_custom_call.1} parent=1 // pred_fallthru
      _
    // Predicated region
    $region10: #{tpu_custom_call.1} parent=1 // pred_check
      _
    $region11: #{tpu_custom_call.1} parent=1 // pred_check_branch
      %43 = sbr.rel (0) target = $region13
    $region12: #{tpu_custom_call.1} parent=1 // pred_region
      _
    $region13: #{tpu_custom_call.1} parent=1 // pred_fallthru
      _
    // Predicated region
    $region14: #{tpu_custom_call.1} parent=1 // pred_check
      _
    $region15: #{tpu_custom_call.1} parent=1 // pred_check_branch
      %45 = sbr.rel (0) target = $region17
    $region16: #{tpu_custom_call.1} parent=1 // pred_region
      %s47 = ssub.s32 1024, 1024
      %48 = vsyncadd [#allocation6], %s47
      %s49 = sshll.u32 [#allocation7], 4
      %s50 = int_to_ptr.vmem [resolvable:$true] %s49
      %55 = dma.hbm_to_vmem [thread:$0]  %s3, 1024, %s50, [#allocation6], 64, 64, 4
    $region17: #{tpu_custom_call.1} parent=1 // pred_fallthru
      _
    // Predicated region
    $region18: #{tpu_custom_call.1} parent=1 // pred_check
      _
    $region19: #{tpu_custom_call.1} parent=1 // pred_check_branch
      %57 = sbr.rel (0) target = $region21
    $region20: #{tpu_custom_call.1} parent=1 // pred_region
      _
    $region21: #{tpu_custom_call.1} parent=1 // pred_fallthru
      _
    // Predicated region
    $region22: #{tpu_custom_call.1} parent=1 // pred_check
      _
    $region23: #{tpu_custom_call.1} parent=1 // pred_check_branch
      %59 = sbr.rel (0) target = $region25
    $region24: #{tpu_custom_call.1} parent=1 // pred_region
      %s61 = ssub.s32 1024, 1024
      %62 = vsyncadd [#allocation9], %s61
      %s63 = sshll.u32 [#allocation8], 4
      %s64 = int_to_ptr.vmem [resolvable:$true] %s63
      %69 = dma.hbm_to_vmem [thread:$0]  %s5, 1024, %s64, [#allocation9], 64, 64, 4
    $region25: #{tpu_custom_call.1} parent=1 // pred_fallthru
      _
    // Predicated region
    $region26: #{tpu_custom_call.1} parent=1 // pred_check
      _
    $region27: #{tpu_custom_call.1} parent=1 // pred_check_branch
      %71 = sbr.rel (0) target = $region29
    $region28: #{tpu_custom_call.1} parent=1 // pred_region
      _
    $region29: #{tpu_custom_call.1} parent=1 // pred_fallthru
      _
    // Predicated region
    $region30: #{tpu_custom_call.1} parent=1 // pred_check
      _
    $region31: #{tpu_custom_call.1} parent=1 // pred_check_branch
      %73 = sbr.rel (0) target = $region33
    $region32: #{tpu_custom_call.1} parent=1 // pred_region
      %s75 = ssub.s32 1024, 1024
      %76 = vsyncadd [#allocation9], %s75
      %s77 = sshll.u32 [#allocation10], 4
      %s78 = int_to_ptr.vmem [resolvable:$true] %s77
      %83 = dma.hbm_to_vmem [thread:$0]  %s7, 1024, %s78, [#allocation9], 64, 64, 4
    $region33: #{tpu_custom_call.1} parent=1 // pred_fallthru
      _
    // Predicated region
    $region34: #{tpu_custom_call.1} parent=1 // pred_check
      _
    $region35: #{tpu_custom_call.1} parent=1 // pred_check_branch
      %85 = sbr.rel (0) target = $region37
    $region36: #{tpu_custom_call.1} parent=1 // pred_region
      _
    $region37: #{tpu_custom_call.1} parent=1 // pred_fallthru
      _
    // Predicated region
    $region38: #{tpu_custom_call.1} parent=1 // pred_check
      _
    $region39: #{tpu_custom_call.1} parent=1 // pred_check_branch
      %87 = sbr.rel (0) target = $region41
    $region40: #{tpu_custom_call.1} parent=1 // pred_region
      %88 = dma.done [#allocation3], 128
    $region41: #{tpu_custom_call.1} parent=1 // pred_fallthru
      _
    // Predicated region
    $region42: #{tpu_custom_call.1} parent=1 // pred_check
      _
    $region43: #{tpu_custom_call.1} parent=1 // pred_check_branch
      %90 = sbr.rel (0) target = $region45
    $region44: #{tpu_custom_call.1} parent=1 // pred_region
      %91 = dma.done [#allocation6], 256
    $region45: #{tpu_custom_call.1} parent=1 // pred_fallthru
      _
    // Predicated region
    $region46: #{tpu_custom_call.1} parent=1 // pred_check
      _
    $region47: #{tpu_custom_call.1} parent=1 // pred_check_branch
      %93 = sbr.rel (0) target = $region49
    $region48: #{tpu_custom_call.1} parent=1 // pred_region
      %94 = dma.done [#allocation6], 1024
    $region49: #{tpu_custom_call.1} parent=1 // pred_fallthru
      _
    // Predicated region
    $region50: #{tpu_custom_call.1} parent=1 // pred_check
      _
    $region51: #{tpu_custom_call.1} parent=1 // pred_check_branch
      %96 = sbr.rel (0) target = $region53
    $region52: #{tpu_custom_call.1} parent=1 // pred_region
      %97 = dma.done [#allocation9], 1024
    $region53: #{tpu_custom_call.1} parent=1 // pred_fallthru
      _
    // Predicated region
    $region54: #{tpu_custom_call.1} parent=1 // pred_check
      _
    $region55: #{tpu_custom_call.1} parent=1 // pred_check_branch
      %99 = sbr.rel (0) target = $region57
    $region56: #{tpu_custom_call.1} parent=1 // pred_region
      %100 = dma.done [#allocation9], 1024
    $region57: #{tpu_custom_call.1} parent=1 // pred_fallthru
      _
    %v102 = vld [vmem:[#allocation2] sm:$0xf]
    %v103 = vld [vmem:[#allocation2 + $0x4] sm:$0xf]
    %v104 = vld [vmem:[#allocation5] sm:$0xf]
    %v105 = vld [vmem:[#allocation5 + $0x4] sm:$0xf]
    %v106 = vld [vmem:[#allocation5 + $0x8] sm:$0xf]
    %v107 = vld [vmem:[#allocation5 + $0xc] sm:$0xf]
    %v108 = vld [vmem:[%s2] sm:$0x1]
    %v110 = vlaneseq
    %v111 = vshrl.u32 %v110, 7
    %v112 = vsub.s32 0, %v111
    %v113 = vrot.slane %v108, %v112
    %v117 = vunpack.c.l.b16 %v102
    %v118 = vunpack.c.l.b16 %v103
    %v119 = vpack.c.b16 %v118, %v117
    %v124 = vunpack.c.l.b16 %v104
    %v125 = vunpack.c.l.b16 %v105
    %v126 = vunpack.c.l.b16 %v106
    %v127 = vunpack.c.l.b16 %v107
    %v128 = vpack.c.b16 %v125, %v124
    %v129 = vpack.c.b16 %v127, %v126
    %vm132 = vcmask 261120
    %v134 = vsel %vm132, %v119, 0
    %136 = vmatprep.subr.bf16.mxu0 0
    %137 = vmatpush1.bf16.msra.mxu0 0
    %138 = vmatprep.subr.bf16.mxu0 0
    %139 = vmatpush1.bf16.msra.mxu0 0
    %140 = vmatprep.subr.bf16.mxu0 0
    %141 = vmatpush1.bf16.msra.mxu0 0
    %142 = vmatprep.subr.bf16.mxu0 0
    %143 = vmatpush1.bf16.msra.mxu0 0
    %144 = vmatprep.subr.bf16.mxu0 0
    %145 = vmatpush1.bf16.msra.mxu0 0
    %146 = vmatprep.subr.bf16.mxu0 0
    %147 = vmatpush1.bf16.msra.mxu0 0
    %148 = vmatprep.subr.bf16.mxu0 0
    %149 = vmatpush1.bf16.msra.mxu0 %v129
    %150 = vmatprep.subr.bf16.mxu0 0
    %151 = vmatpush1.bf16.msra.mxu0 %v128
    %152 = vmatprep.subr.bf16.mxu0 0
    %153 = vmatpush2.bf16.msra.mxu0 0
    %154 = vmatprep.subr.bf16.mxu0 0
    %155 = vmatpush2.bf16.msra.mxu0 0
    %156 = vmatprep.subr.bf16.mxu0 0
    %157 = vmatpush2.bf16.msra.mxu0 0
    %158 = vmatprep.subr.bf16.mxu0 0
    %159 = vmatpush2.bf16.msra.mxu0 0
    %160 = vmatprep.subr.bf16.mxu0 0
    %161 = vmatpush2.bf16.msra.mxu0 0
    %162 = vmatprep.subr.bf16.mxu0 0
    %163 = vmatpush2.bf16.msra.mxu0 0
    %164 = vmatprep.subr.bf16.mxu0 0
    %165 = vmatpush2.bf16.msra.mxu0 0
    %166 = vmatprep.subr.bf16.mxu0 0
    %167 = vmatpush2.bf16.msra.mxu0 0
    %168 = vmatprep.mubr.bf16.mxu0 0
    %169 = vmatmul.mubr.bf16.gmra.mxu0 %v134
    %v170 = vpop.f32.mrf.mxu0
    %v171 = vadd.f32 %v113, %v170
    %v172 = vpop.f32.mrf.mxu0
    %v173 = vpop.f32.mrf.mxu0
    %v174 = vadd.f32 %v113, %v173
    %v175 = vpop.f32.mrf.mxu0
    %176 = vdwg.mxu0
    %v177 = vmul.f32 %v171, 0.2
    %v178 = vmul.f32 %v174, 0.2
    %v179 = vmax.f32 %v171, %v177
    %v180 = vmax.f32 %v174, %v178
    %v181 = vpack.c.bf16 %v180, %v179
    %v182 = vld [vmem:[#allocation7] sm:$0xf]
    %v183 = vld [vmem:[#allocation7 + $0x4] sm:$0xf]
    %v184 = vld [vmem:[#allocation7 + $0x8] sm:$0xf]
    %v185 = vld [vmem:[#allocation7 + $0xc] sm:$0xf]
    %v186 = vld [vmem:[#allocation7 + $0x10] sm:$0xf]
    %v187 = vld [vmem:[#allocation7 + $0x14] sm:$0xf]
    %v188 = vld [vmem:[#allocation7 + $0x18] sm:$0xf]
    %v189 = vld [vmem:[#allocation7 + $0x1c] sm:$0xf]
    %v190 = vld [vmem:[#allocation7 + $0x20] sm:$0xf]
    %v191 = vld [vmem:[#allocation7 + $0x24] sm:$0xf]
    %v192 = vld [vmem:[#allocation7 + $0x28] sm:$0xf]
    %v193 = vld [vmem:[#allocation7 + $0x2c] sm:$0xf]
    %v194 = vld [vmem:[#allocation7 + $0x30] sm:$0xf]
    %v195 = vld [vmem:[#allocation7 + $0x34] sm:$0xf]
    %v196 = vld [vmem:[#allocation7 + $0x38] sm:$0xf]
    %v197 = vld [vmem:[#allocation7 + $0x3c] sm:$0xf]
    %v198 = vld [vmem:[%s4] sm:$0x1]
    %v200 = vlaneseq
    %v201 = vshrl.u32 %v200, 7
    %v202 = vsub.s32 0, %v201
    %v203 = vrot.slane %v198, %v202
    %v221 = vunpack.c.l.b16 %v182
    %v222 = vunpack.c.l.b16 %v183
    %v223 = vunpack.c.l.b16 %v184
    %v224 = vunpack.c.l.b16 %v185
    %v225 = vunpack.c.l.b16 %v186
    %v226 = vunpack.c.l.b16 %v187
    %v227 = vunpack.c.l.b16 %v188
    %v228 = vunpack.c.l.b16 %v189
    %v229 = vunpack.c.l.b16 %v190
    %v230 = vunpack.c.l.b16 %v191
    %v231 = vunpack.c.l.b16 %v192
    %v232 = vunpack.c.l.b16 %v193
    %v233 = vunpack.c.l.b16 %v194
    %v234 = vunpack.c.l.b16 %v195
    %v235 = vunpack.c.l.b16 %v196
    %v236 = vunpack.c.l.b16 %v197
    %v237 = vpack.c.b16 %v222, %v221
    %v238 = vpack.c.b16 %v224, %v223
    %v239 = vpack.c.b16 %v226, %v225
    %v240 = vpack.c.b16 %v228, %v227
    %v241 = vpack.c.b16 %v230, %v229
    %v242 = vpack.c.b16 %v232, %v231
    %v243 = vpack.c.b16 %v234, %v233
    %v244 = vpack.c.b16 %v236, %v235
    %253 = vmatprep.subr.bf16.mxu0 0
    %254 = vmatpush1.bf16.msra.mxu0 %v244
    %255 = vmatprep.subr.bf16.mxu0 0
    %256 = vmatpush1.bf16.msra.mxu0 %v243
    %257 = vmatprep.subr.bf16.mxu0 0
    %258 = vmatpush1.bf16.msra.mxu0 %v242
    %259 = vmatprep.subr.bf16.mxu0 0
    %260 = vmatpush1.bf16.msra.mxu0 %v241
    %261 = vmatprep.subr.bf16.mxu0 0
    %262 = vmatpush1.bf16.msra.mxu0 %v240
    %263 = vmatprep.subr.bf16.mxu0 0
    %264 = vmatpush1.bf16.msra.mxu0 %v239
    %265 = vmatprep.subr.bf16.mxu0 0
    %266 = vmatpush1.bf16.msra.mxu0 %v238
    %267 = vmatprep.subr.bf16.mxu0 0
    %268 = vmatpush1.bf16.msra.mxu0 %v237
    %269 = vmatprep.subr.bf16.mxu0 0
    %270 = vmatpush2.bf16.msra.mxu0 0
    %271 = vmatprep.subr.bf16.mxu0 0
    %272 = vmatpush2.bf16.msra.mxu0 0
    %273 = vmatprep.subr.bf16.mxu0 0
    %274 = vmatpush2.bf16.msra.mxu0 0
    %275 = vmatprep.subr.bf16.mxu0 0
    %276 = vmatpush2.bf16.msra.mxu0 0
    %277 = vmatprep.subr.bf16.mxu0 0
    %278 = vmatpush2.bf16.msra.mxu0 0
    %279 = vmatprep.subr.bf16.mxu0 0
    %280 = vmatpush2.bf16.msra.mxu0 0
    %281 = vmatprep.subr.bf16.mxu0 0
    %282 = vmatpush2.bf16.msra.mxu0 0
    %283 = vmatprep.subr.bf16.mxu0 0
    %284 = vmatpush2.bf16.msra.mxu0 0
    %285 = vmatprep.mubr.bf16.mxu0 0
    %286 = vmatmul.mubr.bf16.gmra.mxu0 %v181
    %v287 = vpop.f32.mrf.mxu0
    %v288 = vadd.f32 %v203, %v287
    %v289 = vpop.f32.mrf.mxu0
    %v290 = vpop.f32.mrf.mxu0
    %v291 = vadd.f32 %v203, %v290
    %v292 = vpop.f32.mrf.mxu0
    %293 = vdwg.mxu0
    %v294 = vmul.f32 %v288, 0.2
    %v295 = vmul.f32 %v291, 0.2
    %v296 = vmax.f32 %v288, %v294
    %v297 = vmax.f32 %v291, %v295
    %v298 = vpack.c.bf16 %v297, %v296
    %v299 = vld [vmem:[#allocation8] sm:$0xf]
    %v300 = vld [vmem:[#allocation8 + $0x4] sm:$0xf]
    %v301 = vld [vmem:[#allocation8 + $0x8] sm:$0xf]
    %v302 = vld [vmem:[#allocation8 + $0xc] sm:$0xf]
    %v303 = vld [vmem:[#allocation8 + $0x10] sm:$0xf]
    %v304 = vld [vmem:[#allocation8 + $0x14] sm:$0xf]
    %v305 = vld [vmem:[#allocation8 + $0x18] sm:$0xf]
    %v306 = vld [vmem:[#allocation8 + $0x1c] sm:$0xf]
    %v307 = vld [vmem:[#allocation8 + $0x20] sm:$0xf]
    %v308 = vld [vmem:[#allocation8 + $0x24] sm:$0xf]
    %v309 = vld [vmem:[#allocation8 + $0x28] sm:$0xf]
    %v310 = vld [vmem:[#allocation8 + $0x2c] sm:$0xf]
    %v311 = vld [vmem:[#allocation8 + $0x30] sm:$0xf]
    %v312 = vld [vmem:[#allocation8 + $0x34] sm:$0xf]
    %v313 = vld [vmem:[#allocation8 + $0x38] sm:$0xf]
    %v314 = vld [vmem:[#allocation8 + $0x3c] sm:$0xf]
    %v315 = vld [vmem:[%s6] sm:$0x1]
    %v317 = vlaneseq
    %v318 = vshrl.u32 %v317, 7
    %v319 = vsub.s32 0, %v318
    %v320 = vrot.slane %v315, %v319
    %v338 = vunpack.c.l.b16 %v299
    %v339 = vunpack.c.l.b16 %v300
    %v340 = vunpack.c.l.b16 %v301
    %v341 = vunpack.c.l.b16 %v302
    %v342 = vunpack.c.l.b16 %v303
    %v343 = vunpack.c.l.b16 %v304
    %v344 = vunpack.c.l.b16 %v305
    %v345 = vunpack.c.l.b16 %v306
    %v346 = vunpack.c.l.b16 %v307
    %v347 = vunpack.c.l.b16 %v308
    %v348 = vunpack.c.l.b16 %v309
    %v349 = vunpack.c.l.b16 %v310
    %v350 = vunpack.c.l.b16 %v311
    %v351 = vunpack.c.l.b16 %v312
    %v352 = vunpack.c.l.b16 %v313
    %v353 = vunpack.c.l.b16 %v314
    %v354 = vpack.c.b16 %v339, %v338
    %v355 = vpack.c.b16 %v341, %v340
    %v356 = vpack.c.b16 %v343, %v342
    %v357 = vpack.c.b16 %v345, %v344
    %v358 = vpack.c.b16 %v347, %v346
    %v359 = vpack.c.b16 %v349, %v348
    %v360 = vpack.c.b16 %v351, %v350
    %v361 = vpack.c.b16 %v353, %v352
    %370 = vmatprep.subr.bf16.mxu0 0
    %371 = vmatpush1.bf16.msra.mxu0 %v361
    %372 = vmatprep.subr.bf16.mxu0 0
    %373 = vmatpush1.bf16.msra.mxu0 %v360
    %374 = vmatprep.subr.bf16.mxu0 0
    %375 = vmatpush1.bf16.msra.mxu0 %v359
    %376 = vmatprep.subr.bf16.mxu0 0
    %377 = vmatpush1.bf16.msra.mxu0 %v358
    %378 = vmatprep.subr.bf16.mxu0 0
    %379 = vmatpush1.bf16.msra.mxu0 %v357
    %380 = vmatprep.subr.bf16.mxu0 0
    %381 = vmatpush1.bf16.msra.mxu0 %v356
    %382 = vmatprep.subr.bf16.mxu0 0
    %383 = vmatpush1.bf16.msra.mxu0 %v355
    %384 = vmatprep.subr.bf16.mxu0 0
    %385 = vmatpush1.bf16.msra.mxu0 %v354
    %386 = vmatprep.subr.bf16.mxu0 0
    %387 = vmatpush2.bf16.msra.mxu0 0
    %388 = vmatprep.subr.bf16.mxu0 0
    %389 = vmatpush2.bf16.msra.mxu0 0
    %390 = vmatprep.subr.bf16.mxu0 0
    %391 = vmatpush2.bf16.msra.mxu0 0
    %392 = vmatprep.subr.bf16.mxu0 0
    %393 = vmatpush2.bf16.msra.mxu0 0
    %394 = vmatprep.subr.bf16.mxu0 0
    %395 = vmatpush2.bf16.msra.mxu0 0
    %396 = vmatprep.subr.bf16.mxu0 0
    %397 = vmatpush2.bf16.msra.mxu0 0
    %398 = vmatprep.subr.bf16.mxu0 0
    %399 = vmatpush2.bf16.msra.mxu0 0
    %400 = vmatprep.subr.bf16.mxu0 0
    %401 = vmatpush2.bf16.msra.mxu0 0
    %402 = vmatprep.mubr.bf16.mxu0 0
    %403 = vmatmul.mubr.bf16.gmra.mxu0 %v298
    %v404 = vpop.f32.mrf.mxu0
    %v405 = vadd.f32 %v320, %v404
    %v406 = vpop.f32.mrf.mxu0
    %v407 = vpop.f32.mrf.mxu0
    %v408 = vadd.f32 %v320, %v407
    %v409 = vpop.f32.mrf.mxu0
    %410 = vdwg.mxu0
    %v411 = vmul.f32 %v405, 0.2
    %v412 = vmul.f32 %v408, 0.2
    %v413 = vmax.f32 %v405, %v411
    %v414 = vmax.f32 %v408, %v412
    %v415 = vpack.c.bf16 %v414, %v413
    %v416 = vld [vmem:[#allocation10] sm:$0xf]
    %v417 = vld [vmem:[#allocation10 + $0x4] sm:$0xf]
    %v418 = vld [vmem:[#allocation10 + $0x8] sm:$0xf]
    %v419 = vld [vmem:[#allocation10 + $0xc] sm:$0xf]
    %v420 = vld [vmem:[#allocation10 + $0x10] sm:$0xf]
    %v421 = vld [vmem:[#allocation10 + $0x14] sm:$0xf]
    %v422 = vld [vmem:[#allocation10 + $0x18] sm:$0xf]
    %v423 = vld [vmem:[#allocation10 + $0x1c] sm:$0xf]
    %v424 = vld [vmem:[#allocation10 + $0x20] sm:$0xf]
    %v425 = vld [vmem:[#allocation10 + $0x24] sm:$0xf]
    %v426 = vld [vmem:[#allocation10 + $0x28] sm:$0xf]
    %v427 = vld [vmem:[#allocation10 + $0x2c] sm:$0xf]
    %v428 = vld [vmem:[#allocation10 + $0x30] sm:$0xf]
    %v429 = vld [vmem:[#allocation10 + $0x34] sm:$0xf]
    %v430 = vld [vmem:[#allocation10 + $0x38] sm:$0xf]
    %v431 = vld [vmem:[#allocation10 + $0x3c] sm:$0xf]
    %v432 = vld [vmem:[%s8] sm:$0x1]
    %v434 = vlaneseq
    %v435 = vshrl.u32 %v434, 7
    %v436 = vsub.s32 0, %v435
    %v437 = vrot.slane %v432, %v436
    %v455 = vunpack.c.l.b16 %v416
    %v456 = vunpack.c.l.b16 %v417
    %v457 = vunpack.c.l.b16 %v418
    %v458 = vunpack.c.l.b16 %v419
    %v459 = vunpack.c.l.b16 %v420
    %v460 = vunpack.c.l.b16 %v421
    %v461 = vunpack.c.l.b16 %v422
    %v462 = vunpack.c.l.b16 %v423
    %v463 = vunpack.c.l.b16 %v424
    %v464 = vunpack.c.l.b16 %v425
    %v465 = vunpack.c.l.b16 %v426
    %v466 = vunpack.c.l.b16 %v427
    %v467 = vunpack.c.l.b16 %v428
    %v468 = vunpack.c.l.b16 %v429
    %v469 = vunpack.c.l.b16 %v430
    %v470 = vunpack.c.l.b16 %v431
    %v471 = vpack.c.b16 %v456, %v455
    %v472 = vpack.c.b16 %v458, %v457
    %v473 = vpack.c.b16 %v460, %v459
    %v474 = vpack.c.b16 %v462, %v461
    %v475 = vpack.c.b16 %v464, %v463
    %v476 = vpack.c.b16 %v466, %v465
    %v477 = vpack.c.b16 %v468, %v467
    %v478 = vpack.c.b16 %v470, %v469
    %487 = vmatprep.subr.bf16.mxu0 0
    %488 = vmatpush1.bf16.msra.mxu0 %v478
    %489 = vmatprep.subr.bf16.mxu0 0
    %490 = vmatpush1.bf16.msra.mxu0 %v477
    %491 = vmatprep.subr.bf16.mxu0 0
    %492 = vmatpush1.bf16.msra.mxu0 %v476
    %493 = vmatprep.subr.bf16.mxu0 0
    %494 = vmatpush1.bf16.msra.mxu0 %v475
    %495 = vmatprep.subr.bf16.mxu0 0
    %496 = vmatpush1.bf16.msra.mxu0 %v474
    %497 = vmatprep.subr.bf16.mxu0 0
    %498 = vmatpush1.bf16.msra.mxu0 %v473
    %499 = vmatprep.subr.bf16.mxu0 0
    %500 = vmatpush1.bf16.msra.mxu0 %v472
    %501 = vmatprep.subr.bf16.mxu0 0
    %502 = vmatpush1.bf16.msra.mxu0 %v471
    %503 = vmatprep.subr.bf16.mxu0 0
    %504 = vmatpush2.bf16.msra.mxu0 0
    %505 = vmatprep.subr.bf16.mxu0 0
    %506 = vmatpush2.bf16.msra.mxu0 0
    %507 = vmatprep.subr.bf16.mxu0 0
    %508 = vmatpush2.bf16.msra.mxu0 0
    %509 = vmatprep.subr.bf16.mxu0 0
    %510 = vmatpush2.bf16.msra.mxu0 0
    %511 = vmatprep.subr.bf16.mxu0 0
    %512 = vmatpush2.bf16.msra.mxu0 0
    %513 = vmatprep.subr.bf16.mxu0 0
    %514 = vmatpush2.bf16.msra.mxu0 0
    %515 = vmatprep.subr.bf16.mxu0 0
    %516 = vmatpush2.bf16.msra.mxu0 0
    %517 = vmatprep.subr.bf16.mxu0 0
    %518 = vmatpush2.bf16.msra.mxu0 0
    %519 = vmatprep.mubr.bf16.mxu0 0
    %520 = vmatmul.mubr.bf16.gmra.mxu0 %v415
    %v521 = vpop.f32.mrf.mxu0
    %v522 = vadd.f32 %v437, %v521
    %v523 = vpop.f32.mrf.mxu0
    %v524 = vpop.f32.mrf.mxu0
    %v525 = vadd.f32 %v437, %v524
    %v526 = vpop.f32.mrf.mxu0
    %527 = vdwg.mxu0
    %v528 = vpack.c.bf16 %v525, %v522
    %v530 = vunpack.c.l.b16 %v528
    %v531 = vunpack.c.h.b16 %v528
    %v532 = vpack.c.b16 %v530, %v530
    %v533 = vpack.c.b16 %v531, %v531
    %536 = vst [vmem:[#allocation11] sm:$0xf] %v532
    %537 = vst [vmem:[#allocation11 + $0x4] sm:$0xf] %v533
    // Predicated region
    $region58: #{tpu_custom_call.1} parent=1 // pred_check
      _
    $region59: #{tpu_custom_call.1} parent=1 // pred_check_branch
      %539 = sbr.rel (0) target = $region61
    $region60: #{tpu_custom_call.1} parent=1 // pred_region
      %s541 = ssub.s32 128, 128
      %542 = vsyncadd [#allocation4], %s541
      %s543 = sshll.u32 [#allocation11], 4
      %s544 = int_to_ptr.vmem [resolvable:$true] %s543
      %549 = dma.vmem_to_hbm [thread:$0]  %s544, 128, %s9, [#allocation4], 64, 64, 4
    $region61: #{tpu_custom_call.1} parent=1 // pred_fallthru
      _
    // Predicated region
    $region62: #{tpu_custom_call.1} parent=1 // pred_check
      _
    $region63: #{tpu_custom_call.1} parent=1 // pred_check_branch
      %551 = sbr.rel (0) target = $region65
    $region64: #{tpu_custom_call.1} parent=1 // pred_region
      %552 = dma.done [#allocation4], 128
    $region65: #{tpu_custom_call.1} parent=1 // pred_fallthru
      _
    %553 = vsyncpa [#allocation3], 1
    %554 = vsyncpa [#allocation6], 1
    %555 = vsyncpa [#allocation9], 1
    %556 = vsyncpa [#allocation4], 1

</llo_original>
